<compile_context>
chip_gen: v7x
topology: tpu7x:2x2x1
jax: 0.10.0
libtpu: 0.0.40
codegen_flags: <defaults>
</compile_context>

<pallas_src>
import jax
import jax.numpy as jnp
from jax.experimental import pallas as pl
from jax.experimental.pallas import tpu as pltpu

# Static permutation taken from PermuteModule.forward().
PERM = (0, 1)


# ---------------------------------------------------------------------------
# 0) Trace-level identity: the genuinely zero-cost implementation.
# ---------------------------------------------------------------------------
def permute_identity(x: jax.Array) -> jax.Array:
    """aten.permute(x, (0, 1)) on 2-D x is the identity."""
    assert x.ndim == len(PERM) and PERM == tuple(range(x.ndim))
    return x


# ---------------------------------------------------------------------------
# 1) Primary Pallas path: single contiguous HBM->HBM DMA copy.
# ---------------------------------------------------------------------------
def _dma_copy_kernel(x_hbm, o_hbm, sem):
    # Identity permutation -> straight copy.  One contiguous descriptor,
    # no VMEM round trip, no XLU/transpose, no per-grid-step overhead.
    cp = pltpu.make_async_copy(x_hbm, o_hbm, sem)
    cp.start()
    cp.wait()


def permute(x: jax.Array) -> jax.Array:
    """Materializing aten.permute(x, (0,1)) via one HBM->HBM DMA."""
    assert x.ndim == len(PERM) and PERM == tuple(range(x.ndim))
    nbytes = x.size * jnp.dtype(x.dtype).itemsize
    return pl.pallas_call(
        _dma_copy_kernel,
        out_shape=jax.ShapeDtypeStruct(x.shape, x.dtype),
        in_specs=[pl.BlockSpec(memory_space=pl.ANY)],
        out_specs=pl.BlockSpec(memory_space=pl.ANY),
        scratch_shapes=[pltpu.SemaphoreType.DMA(())],
        cost_estimate=pl.CostEstimate(
            flops=0, transcendentals=0, bytes_accessed=2 * nbytes),
    )(x)


# ---------------------------------------------------------------------------
# 2) Fallback: BlockSpec-pipelined copy with full-width row blocks.
# ---------------------------------------------------------------------------
def _row_copy_kernel(x_ref, o_ref):
    # Identity permutation: plain vld/vst copy, no jnp.transpose / XLU.
    o_ref[...] = x_ref[...]


def _sublane_quantum(dtype) -> int:
    # Dtype-dependent sublane packing: 8 rows for 4-byte, 16 for 2-byte,
    # 32 for 1-byte dtypes.
    return max(8, 32 // jnp.dtype(dtype).itemsize)


def permute_copy_pipelined(x: jax.Array, *, max_tile_bytes: int = 4 << 20) -> jax.Array:
    """Materializing copy with full-width (lane-dense, contiguous) row blocks."""
    assert x.ndim == 2 and PERM == (0, 1)
    rows, cols = x.shape
    itemsize = jnp.dtype(x.dtype).itemsize
    q = _sublane_quantum(x.dtype)
    # Full-width blocks keep every DMA row contiguous in HBM and all stores
    # unmasked.  Cap per-block footprint (~4 MiB) so double-buffered in+out
    # stays well inside v7x's 64 MiB VMEM; row count is a multiple of the
    # dtype sublane quantum (or the full extent for tiny arrays).
    tr_cap = max(q, (max_tile_bytes // max(1, cols * itemsize)) // q * q)
    tr = rows if rows <= tr_cap else tr_cap
    grid = (pl.cdiv(rows, tr),)
    return pl.pallas_call(
        _row_copy_kernel,
        out_shape=jax.ShapeDtypeStruct((rows, cols), x.dtype),
        grid=grid,
        in_specs=[pl.BlockSpec((tr, cols), lambda i: (i, 0))],
        out_specs=pl.BlockSpec((tr, cols), lambda i: (i, 0)),
        compiler_params=pltpu.CompilerParams(
            dimension_semantics=("parallel",),
            # v5e default scoped VMEM is only 16 MiB; raise it so larger
            # full-width blocks are usable (still far below v7x physical).
            vmem_limit_bytes=48 << 20),
        cost_estimate=pl.CostEstimate(
            flops=0, transcendentals=0,
            bytes_accessed=2 * rows * cols * itemsize),
    )(x)


# ---------------------------------------------------------------------------
# 3) Aliased zero-copy variant (requires buffer donation for true zero-copy).
# ---------------------------------------------------------------------------
def _identity_alias_kernel(x_hbm_ref, o_hbm_ref):
    # Output aliases input and the permutation is the identity: nothing to do.
    del x_hbm_ref, o_hbm_ref


def permute_aliased(x: jax.Array) -> jax.Array:
    """Zero-copy identity via input_output_aliases.

    Only truly zero-copy when the caller donates the input buffer at the jit
    boundary (jax.jit(..., donate_argnums=...)); otherwise XLA inserts a
    defensive copy.  Prefer permute_identity() when no Pallas entry point is
    required.
    """
    assert x.ndim == len(PERM) and PERM == tuple(range(x.ndim))
    return pl.pallas_call(
        _identity_alias_kernel,
        out_shape=jax.ShapeDtypeStruct(x.shape, x.dtype),
        in_specs=[pl.BlockSpec(memory_space=pl.ANY)],
        out_specs=pl.BlockSpec(memory_space=pl.ANY),
        input_output_aliases={0: 0},
        cost_estimate=pl.CostEstimate(flops=0, transcendentals=0, bytes_accessed=0),
    )(x)


if __name__ == "__main__":
    key = jax.random.PRNGKey(0)
    # matches get_example_inputs(): torch.randn(2, 3)
    x = jax.random.normal(key, (2, 3), dtype=jnp.float32)

    # reference: permute with (0, 1) is the identity for a 2-D tensor
    ref = jnp.transpose(x, PERM)

    # primary Pallas path: single HBM->HBM DMA copy
    y = jax.block_until_ready(permute(x))
    assert y.shape == ref.shape and y.dtype == ref.dtype
    assert jnp.array_equal(y, ref)

    # pipelined full-width row-block copy fallback
    y_pipe = jax.block_until_ready(permute_copy_pipelined(x))
    assert y_pipe.shape == ref.shape and y_pipe.dtype == ref.dtype
    assert jnp.array_equal(y_pipe, ref)

    # aliased zero-copy variant (defensive copy here since x is not donated)
    y_alias = jax.block_until_ready(permute_aliased(x))
    assert y_alias.shape == ref.shape and y_alias.dtype == ref.dtype
    assert jnp.array_equal(y_alias, ref)

    # trace-level identity (the truly zero-cost implementation)
    y_id = jax.block_until_ready(permute_identity(x))
    assert jnp.array_equal(y_id, ref)

    print("KERNEL_OK")
</pallas_src>

<mosaic_0001>
module attributes {stable_mosaic.version = 11 : i64} {
  func.func @_dma_copy_kernel(%arg0: memref<2x3xf32, #tpu.memory_space<any>>, %arg1: memref<2x3xf32, #tpu.memory_space<any>>, %arg2: memref<!tpu.dma_semaphore, #tpu.memory_space<semaphore_mem>>) attributes {dimension_semantics = [], scalar_prefetch = 0 : i64, scratch_operands = 1 : i64, tpu.core_type = #tpu.core_type<tc>} {
    tpu.enqueue_dma source(%arg0 : memref<2x3xf32, #tpu.memory_space<any>>) target(%arg1 : memref<2x3xf32, #tpu.memory_space<any>>) target_semaphore(%arg2 : memref<!tpu.dma_semaphore, #tpu.memory_space<semaphore_mem>>)
    tpu.wait_dma2 semaphore(%arg2 : memref<!tpu.dma_semaphore, #tpu.memory_space<semaphore_mem>>) src(%arg0 : memref<2x3xf32, #tpu.memory_space<any>>) dst(%arg1 : memref<2x3xf32, #tpu.memory_space<any>>)
    return
  }
}

</mosaic_0001>

<llo_original>
// kernel: tpu_custom_call.1
$region0: #{tpu_custom_call.1}
  #allocation0 [shape = 'u32[]', space=smem, size = 0x4, offset = 0x4, fixed_abs, tag = 'smem constant byte address 0x4 - core index']
  #allocation1 [shape = 'u32[144,128]{1,0:T(1,128)}', space=vmem, size = 0x12000, scoped, tag = 'internal scratch']
  #allocation2 [shape = 's32[1]{0}', space=sflag, size = 0x4, scoped, tag = 'scratch operand']
  #allocation3 [shape = 's32[]', space=sflag, size = 0x4, offset = 0, fixed_abs, tag = 'sflag constant byte address 0x0 - dummy sync flag']
  #allocation4 [shape = 'u32[0]{0}', space=smem, size = 0, offset = 0, fixed_abs, tag = 'smem constant byte address 0x0 - null']
  %s0 = inlined_call_operand.hbm [shape: f32[2,3], index: 0, kind: input, shape index: {}]
  %s1 = inlined_call_operand.hbm [shape: f32[2,3], index: 1, kind: output, shape index: {}]
  %s2 = sld [smem:[#allocation0]]
  $region2: #{tpu_custom_call.1} parent=0
    _
  %s4 = ssub.s32 1, %s2
  %s5 = scalar_select 0, %s4, %s2
  %s7 = sshll.u32 1, 14
  %s8 = sxor.u32 4294967295, %s7
  %s11 = sshll.u32 3, 24
  %s12 = sxor.u32 4294967295, %s11
  %s13 = sand.u32 0, %s12
  %s15 = sor.u32 %s13, 0
  %18 = dma.general %s0, 32, %s1, [#allocation2], [#allocation3], [#allocation4], %s15, 0
  %s19 = smul.u32 2, 1
  %s20 = sshll.u32 %s19, 4
  %21 = dma.done [#allocation2], %s20
  %22 = vsyncmov [#allocation2]
  %s23 = vpop.sfrf %22
  %p24 = scmp.eq.s32.totalorder %s23, 0
  %p25 = pneg %p24
  %27 = shalt.err (%p25)

</llo_original>
